<compile_context>
chip_gen: v7x
topology: tpu7x:2x2x1
jax: 0.10.0
libtpu: 0.0.40
codegen_flags: <defaults>
</compile_context>

<pallas_src>
import functools

import jax
import jax.numpy as jnp
from jax.experimental import pallas as pl
from jax.experimental.pallas import tpu as pltpu


def _round_up(x, m):
    return ((x + m - 1) // m) * m


def _kl_loss_kernel(e_ref, p_ref, scores_part_ref, xent_part_ref,
                    *, inv_temp, n_valid, tn, d):
    """Per-block partial sums of KL-div scores and log_softmax(e)*p."""
    i = pl.program_id(0)

    e = e_ref[...].astype(jnp.float32)
    p = p_ref[...].astype(jnp.float32)

    # Rows beyond n_valid are zero padding; mask their contribution.
    row_ids = i * tn + jax.lax.broadcasted_iota(jnp.int32, (tn, 1), 0)
    row_mask = row_ids < n_valid

    # probs = log_softmax(embeddings / temp, dim=1)
    et = e * inv_temp
    m1 = jnp.max(et, axis=-1, keepdims=True)
    lse1 = jnp.log(jnp.sum(jnp.exp(et - m1), axis=-1, keepdims=True))
    log_probs = et - m1 - lse1

    # targets = softmax(positives / temp, dim=1) (and its log, computed stably)
    pt = p * inv_temp
    m2 = jnp.max(pt, axis=-1, keepdims=True)
    ex2 = jnp.exp(pt - m2)
    s2 = jnp.sum(ex2, axis=-1, keepdims=True)
    log_s2 = jnp.log(s2)
    inv_s2 = 1.0 / s2                      # one divide per row, not per element
    targets = ex2 * inv_s2
    log_targets = pt - m2 - log_s2

    # F.kl_div(log_probs, targets, reduction='none')
    #   = targets * (log(targets) - log_probs), defined as 0 where targets == 0
    scores = jnp.where(targets > 0.0, targets * (log_targets - log_probs), 0.0)
    scores = jnp.where(row_mask, scores, 0.0)

    # BCE term: log_softmax(embeddings, dim=1) * positives (no temperature)
    m3 = jnp.max(e, axis=-1, keepdims=True)
    lse3 = jnp.log(jnp.sum(jnp.exp(e - m3), axis=-1, keepdims=True))
    xent = (e - m3 - lse3) * p
    xent = jnp.where(row_mask, xent, 0.0)

    # Fold (tn, D) -> (8, D) by summing groups of 8 sublane rows: the reshape is
    # layout-preserving and the axis-0 sum is pure VPU vreg adds (no XLU
    # cross-lane reduce, no masked scalar store in the hot loop).
    scores_part_ref[...] = jnp.sum(scores.reshape(tn // 8, 8, d), axis=0)[None]
    xent_part_ref[...] = jnp.sum(xent.reshape(tn // 8, 8, d), axis=0)[None]


def kl_divergence_loss(embeddings, positives, *, temp, beta=0.5, anneal=1.0):
    """Reproduces KLDivergenceLoss.forward -> (total_loss, scores_mean, bce_loss)."""
    N, D = embeddings.shape
    assert positives.shape == (N, D)

    # --- tile selection: biggest row tile whose double-buffered input tiles fit
    # a conservative VMEM budget (safe on v7x's 64 MiB physical VMEM too).
    per_row_bytes = D * (jnp.dtype(embeddings.dtype).itemsize
                         + jnp.dtype(positives.dtype).itemsize)
    tile_budget_bytes = 8 * 1024 * 1024          # for 2 inputs x 2 pipeline bufs
    tn = tile_budget_bytes // (2 * per_row_bytes)
    tn = max(8, (tn // 8) * 8)
    tn = min(tn, 1024)
    tn = min(tn, _round_up(N, 8))                # don't over-pad small N
    n_pad = _round_up(N, tn)
    grid = (n_pad // tn,)

    if n_pad != N:
        pad_cfg = ((0, n_pad - N), (0, 0))
        embeddings = jnp.pad(embeddings, pad_cfg)
        positives = jnp.pad(positives, pad_cfg)

    kernel = functools.partial(
        _kl_loss_kernel, inv_temp=1.0 / float(temp), n_valid=N, tn=tn, d=D)

    scores_parts, xent_parts = pl.pallas_call(
        kernel,
        out_shape=(
            jax.ShapeDtypeStruct((grid[0], 8, D), jnp.float32),
            jax.ShapeDtypeStruct((grid[0], 8, D), jnp.float32),
        ),
        grid_spec=pltpu.PrefetchScalarGridSpec(
            num_scalar_prefetch=0,
            grid=grid,
            in_specs=[
                pl.BlockSpec((tn, D), lambda i: (i, 0)),
                pl.BlockSpec((tn, D), lambda i: (i, 0)),
            ],
            out_specs=(
                pl.BlockSpec((1, 8, D), lambda i: (i, 0, 0)),
                pl.BlockSpec((1, 8, D), lambda i: (i, 0, 0)),
            ),
        ),
        compiler_params=pltpu.CompilerParams(
            dimension_semantics=("parallel",),      # no cross-step dependence
            vmem_limit_bytes=32 * 1024 * 1024,
        ),
    )(embeddings, positives)

    # Final (tiny) reductions + scalar normalizations in plain JAX.
    S = jnp.sum(scores_parts)   # sum over all elements of KL scores
    B = jnp.sum(xent_parts)     # sum over all elements of log_softmax(e) * p

    # BinaryCrossEntropyLossSoftmax with mu=None, logvar=None:
    #   BCE = -mean(mean(log_softmax(e,1)*p, -1));  KLD = 0
    bce = -B / jnp.float32(N * D)
    kld = jnp.zeros_like(bce)
    bce_loss = bce + jnp.float32(anneal) * kld

    scores_sum_dim1_mean = S / jnp.float32(N)        # scores.sum(dim=1).mean()
    scores_mean_dim1_mean = S / jnp.float32(N * D)   # scores.mean(dim=1).mean()

    total_loss = (jnp.float32(beta) * scores_sum_dim1_mean
                  + jnp.float32(1.0 - beta) * bce_loss)
    return total_loss, scores_mean_dim1_mean, bce_loss


def _reference(embeddings, positives, *, temp, beta=0.5, anneal=1.0):
    """Pure-JAX reference mirroring the PyTorch module, for verification."""
    e = embeddings.astype(jnp.float32)
    p = positives.astype(jnp.float32)
    log_probs = jax.nn.log_softmax(e / temp, axis=1)
    targets = jax.nn.softmax(p / temp, axis=1)
    scores = jnp.where(targets > 0.0,
                       targets * (jnp.log(targets) - log_probs), 0.0)
    bce = -jnp.mean(jnp.mean(jax.nn.log_softmax(e, axis=1) * p, axis=-1))
    bce_loss = bce + anneal * 0.0
    total = beta * jnp.mean(jnp.sum(scores, axis=1)) + (1.0 - beta) * bce_loss
    return total, jnp.mean(jnp.mean(scores, axis=1)), bce_loss


if __name__ == "__main__":
    BETA = 0.5
    ANNEAL = 1.0

    key = jax.random.PRNGKey(0)

    # Case 1: small f32, N not a multiple of 8 (exercises padding + row masking).
    k1, k2, key = jax.random.split(key, 3)
    N, D = 10, 32
    emb = jax.random.normal(k1, (N, D), dtype=jnp.float32)
    pos = jax.random.normal(k2, (N, D), dtype=jnp.float32)
    out = jax.block_until_ready(
        kl_divergence_loss(emb, pos, temp=0.5, beta=BETA, anneal=ANNEAL))
    ref = _reference(emb, pos, temp=0.5, beta=BETA, anneal=ANNEAL)
    for got, want in zip(out, ref):
        assert jnp.allclose(got, want, rtol=1e-5, atol=1e-5), (got, want)

    # Case 2: bf16 inputs read natively from HBM (cast to f32 on-chip), lane-full D.
    k3, k4, key = jax.random.split(key, 3)
    N2, D2 = 64, 128
    emb2 = jax.random.normal(k3, (N2, D2), dtype=jnp.float32).astype(jnp.bfloat16)
    pos2 = jax.random.normal(k4, (N2, D2), dtype=jnp.float32).astype(jnp.bfloat16)
    out2 = jax.block_until_ready(
        kl_divergence_loss(emb2, pos2, temp=0.7, beta=BETA, anneal=ANNEAL))
    ref2 = _reference(emb2, pos2, temp=0.7, beta=BETA, anneal=ANNEAL)
    for got, want in zip(out2, ref2):
        assert jnp.allclose(got, want, rtol=2e-5, atol=2e-5), (got, want)

    # TODO(synk): anneal_beta() is host-side Python schedule logic, not part of the
    # forward pass, so it is intentionally not ported into the kernel.
    print("KERNEL_OK")
</pallas_src>

<mosaic_0001>
module attributes {stable_mosaic.version = 11 : i64} {
  func.func @_kl_loss_kernel(%arg0: i32, %arg1: memref<16x32xf32, #tpu.memory_space<vmem>>, %arg2: memref<16x32xf32, #tpu.memory_space<vmem>>, %arg3: memref<1x8x32xf32, #tpu.memory_space<vmem>>, %arg4: memref<1x8x32xf32, #tpu.memory_space<vmem>>) attributes {dimension_semantics = [#tpu.dimension_semantics<parallel>], iteration_bounds = array<i64: 1>, scalar_prefetch = 0 : i64, scratch_operands = 0 : i64, tpu.core_type = #tpu.core_type<tc>, window_params = [{transform_indices = @transform_0, window_bounds = array<i64: 16, 32>}, {transform_indices = @transform_1, window_bounds = array<i64: 16, 32>}, {transform_indices = @transform_2, window_bounds = array<i64: 1, 8, 32>}, {transform_indices = @transform_3, window_bounds = array<i64: 1, 8, 32>}]} {
    %c0 = arith.constant 0 : index
    %c0_0 = arith.constant 0 : index
    %0 = vector.load %arg1[%c0, %c0_0] : memref<16x32xf32, #tpu.memory_space<vmem>>, vector<16x32xf32>
    %c0_1 = arith.constant 0 : index
    %c0_2 = arith.constant 0 : index
    %1 = vector.load %arg2[%c0_1, %c0_2] : memref<16x32xf32, #tpu.memory_space<vmem>>, vector<16x32xf32>
    %c16_i32 = arith.constant 16 : i32
    %2 = arith.muli %arg0, %c16_i32 : i32
    %3 = tpu.iota {dimensions = array<i32: 0>} : vector<16x1xi32>
    %4 = vector.broadcast %2 : i32 to vector<16x1xi32>
    %5 = arith.addi %4, %3 : vector<16x1xi32>
    %c10_i32 = arith.constant 10 : i32
    %6 = vector.broadcast %c10_i32 : i32 to vector<16x1xi32>
    %7 = arith.cmpi slt, %5, %6 : vector<16x1xi32>
    %cst = arith.constant 2.000000e+00 : f32
    %8 = vector.broadcast %cst : f32 to vector<16x32xf32>
    %9 = arith.mulf %0, %8 : vector<16x32xf32>
    %cst_3 = arith.constant dense<0xFF800000> : vector<16xf32>
    %10 = vector.multi_reduction <maximumf>, %9, %cst_3 [1] : vector<16x32xf32> to vector<16xf32>
    %11 = vector.shape_cast %10 : vector<16xf32> to vector<16x1xf32>
    %12 = vector.broadcast %11 : vector<16x1xf32> to vector<16x32xf32>
    %13 = arith.subf %9, %12 : vector<16x32xf32>
    %14 = math.exp %13 : vector<16x32xf32>
    %cst_4 = arith.constant dense<0.000000e+00> : vector<16xf32>
    %15 = vector.multi_reduction <add>, %14, %cst_4 [1] : vector<16x32xf32> to vector<16xf32>
    %16 = vector.shape_cast %15 : vector<16xf32> to vector<16x1xf32>
    %17 = math.log %16 : vector<16x1xf32>
    %18 = vector.broadcast %11 : vector<16x1xf32> to vector<16x32xf32>
    %19 = arith.subf %9, %18 : vector<16x32xf32>
    %20 = vector.broadcast %17 : vector<16x1xf32> to vector<16x32xf32>
    %21 = arith.subf %19, %20 : vector<16x32xf32>
    %cst_5 = arith.constant 2.000000e+00 : f32
    %22 = vector.broadcast %cst_5 : f32 to vector<16x32xf32>
    %23 = arith.mulf %1, %22 : vector<16x32xf32>
    %cst_6 = arith.constant dense<0xFF800000> : vector<16xf32>
    %24 = vector.multi_reduction <maximumf>, %23, %cst_6 [1] : vector<16x32xf32> to vector<16xf32>
    %25 = vector.shape_cast %24 : vector<16xf32> to vector<16x1xf32>
    %26 = vector.broadcast %25 : vector<16x1xf32> to vector<16x32xf32>
    %27 = arith.subf %23, %26 : vector<16x32xf32>
    %28 = math.exp %27 : vector<16x32xf32>
    %cst_7 = arith.constant dense<0.000000e+00> : vector<16xf32>
    %29 = vector.multi_reduction <add>, %28, %cst_7 [1] : vector<16x32xf32> to vector<16xf32>
    %30 = vector.shape_cast %29 : vector<16xf32> to vector<16x1xf32>
    %31 = math.log %30 : vector<16x1xf32>
    %cst_8 = arith.constant 1.000000e+00 : f32
    %32 = vector.broadcast %cst_8 : f32 to vector<16x1xf32>
    %33 = arith.divf %32, %30 : vector<16x1xf32>
    %34 = vector.broadcast %33 : vector<16x1xf32> to vector<16x32xf32>
    %35 = arith.mulf %28, %34 : vector<16x32xf32>
    %36 = vector.broadcast %25 : vector<16x1xf32> to vector<16x32xf32>
    %37 = arith.subf %23, %36 : vector<16x32xf32>
    %38 = vector.broadcast %31 : vector<16x1xf32> to vector<16x32xf32>
    %39 = arith.subf %37, %38 : vector<16x32xf32>
    %cst_9 = arith.constant 0.000000e+00 : f32
    %40 = vector.broadcast %cst_9 : f32 to vector<16x32xf32>
    %41 = arith.cmpf ogt, %35, %40 : vector<16x32xf32>
    %42 = arith.subf %39, %21 : vector<16x32xf32>
    %43 = arith.mulf %35, %42 : vector<16x32xf32>
    %cst_10 = arith.constant 0.000000e+00 : f32
    %44 = vector.broadcast %cst_10 : f32 to vector<16x32xf32>
    %45 = arith.select %41, %43, %44 : vector<16x32xi1>, vector<16x32xf32>
    %cst_11 = arith.constant 0.000000e+00 : f32
    %46 = vector.shape_cast %7 : vector<16x1xi1> to vector<16x1xi1>
    %47 = vector.broadcast %46 : vector<16x1xi1> to vector<16x32xi1>
    %48 = vector.broadcast %cst_11 : f32 to vector<16x32xf32>
    %49 = arith.select %47, %45, %48 : vector<16x32xi1>, vector<16x32xf32>
    %cst_12 = arith.constant dense<0xFF800000> : vector<16xf32>
    %50 = vector.multi_reduction <maximumf>, %0, %cst_12 [1] : vector<16x32xf32> to vector<16xf32>
    %51 = vector.shape_cast %50 : vector<16xf32> to vector<16x1xf32>
    %52 = vector.broadcast %51 : vector<16x1xf32> to vector<16x32xf32>
    %53 = arith.subf %0, %52 : vector<16x32xf32>
    %54 = math.exp %53 : vector<16x32xf32>
    %cst_13 = arith.constant dense<0.000000e+00> : vector<16xf32>
    %55 = vector.multi_reduction <add>, %54, %cst_13 [1] : vector<16x32xf32> to vector<16xf32>
    %56 = vector.shape_cast %55 : vector<16xf32> to vector<16x1xf32>
    %57 = math.log %56 : vector<16x1xf32>
    %58 = vector.broadcast %51 : vector<16x1xf32> to vector<16x32xf32>
    %59 = arith.subf %0, %58 : vector<16x32xf32>
    %60 = vector.broadcast %57 : vector<16x1xf32> to vector<16x32xf32>
    %61 = arith.subf %59, %60 : vector<16x32xf32>
    %62 = arith.mulf %61, %1 : vector<16x32xf32>
    %cst_14 = arith.constant 0.000000e+00 : f32
    %63 = vector.shape_cast %7 : vector<16x1xi1> to vector<16x1xi1>
    %64 = vector.broadcast %63 : vector<16x1xi1> to vector<16x32xi1>
    %65 = vector.broadcast %cst_14 : f32 to vector<16x32xf32>
    %66 = arith.select %64, %62, %65 : vector<16x32xi1>, vector<16x32xf32>
    %67 = vector.shape_cast %49 : vector<16x32xf32> to vector<2x8x32xf32>
    %cst_15 = arith.constant dense<0.000000e+00> : vector<8x32xf32>
    %68 = vector.multi_reduction <add>, %67, %cst_15 [0] : vector<2x8x32xf32> to vector<8x32xf32>
    %69 = vector.shape_cast %68 : vector<8x32xf32> to vector<1x8x32xf32>
    %c0_16 = arith.constant 0 : index
    %c0_17 = arith.constant 0 : index
    %c0_18 = arith.constant 0 : index
    %70 = vector.load %arg3[%c0_16, %c0_17, %c0_18] : memref<1x8x32xf32, #tpu.memory_space<vmem>>, vector<1x8x32xf32>
    tpu.vector_store %arg3[%c0_16, %c0_17, %c0_18], %69 {strides = array<i32>} : memref<1x8x32xf32, #tpu.memory_space<vmem>>, vector<1x8x32xf32>,
    %71 = vector.shape_cast %66 : vector<16x32xf32> to vector<2x8x32xf32>
    %cst_19 = arith.constant dense<0.000000e+00> : vector<8x32xf32>
    %72 = vector.multi_reduction <add>, %71, %cst_19 [0] : vector<2x8x32xf32> to vector<8x32xf32>
    %73 = vector.shape_cast %72 : vector<8x32xf32> to vector<1x8x32xf32>
    %c0_20 = arith.constant 0 : index
    %c0_21 = arith.constant 0 : index
    %c0_22 = arith.constant 0 : index
    %74 = vector.load %arg4[%c0_20, %c0_21, %c0_22] : memref<1x8x32xf32, #tpu.memory_space<vmem>>, vector<1x8x32xf32>
    tpu.vector_store %arg4[%c0_20, %c0_21, %c0_22], %73 {strides = array<i32>} : memref<1x8x32xf32, #tpu.memory_space<vmem>>, vector<1x8x32xf32>,
    return
  }
  func.func @transform_0(%arg0: i32) -> (i32, i32) {
    %c0_i32 = arith.constant 0 : i32
    %c0_i32_0 = arith.constant 0 : i32
    return %arg0, %c0_i32 : i32, i32
  }
  func.func @transform_1(%arg0: i32) -> (i32, i32) {
    %c0_i32 = arith.constant 0 : i32
    %c0_i32_0 = arith.constant 0 : i32
    return %arg0, %c0_i32 : i32, i32
  }
  func.func @transform_2(%arg0: i32) -> (i32, i32, i32) {
    %c0_i32 = arith.constant 0 : i32
    %c0_i32_0 = arith.constant 0 : i32
    %c0_i32_1 = arith.constant 0 : i32
    return %arg0, %c0_i32, %c0_i32_0 : i32, i32, i32
  }
  func.func @transform_3(%arg0: i32) -> (i32, i32, i32) {
    %c0_i32 = arith.constant 0 : i32
    %c0_i32_0 = arith.constant 0 : i32
    %c0_i32_1 = arith.constant 0 : i32
    return %arg0, %c0_i32, %c0_i32_0 : i32, i32, i32
  }
}

</mosaic_0001>

<llo_original>
// kernel: tpu_custom_call.1
$region0: #{tpu_custom_call.1}
  #allocation0 [shape = 'u32[]', space=smem, size = 0x4, offset = 0x4, fixed_abs, tag = 'smem constant byte address 0x4 - core index']
  #allocation1 [shape = 'u32[144,128]{1,0:T(1,128)}', space=vmem, size = 0x12000, scoped, tag = 'internal scratch']
  %s0 = inlined_call_operand.hbm [shape: f32[16,32], index: 0, kind: input, shape index: {}]
  %s1 = inlined_call_operand.hbm [shape: f32[16,32], index: 1, kind: input, shape index: {}]
  %s2 = inlined_call_operand.hbm [shape: f32[1,8,32], index: 2, kind: output, shape index: {0}]
  %s3 = inlined_call_operand.hbm [shape: f32[1,8,32], index: 3, kind: output, shape index: {1}]
  %4 = xla_tuple %s2, %s3
  %s5 = sld [smem:[#allocation0]]
  $region34: #{tpu_custom_call.1} parent=0
    _
  %s7 = ssub.s32 1, %s5
  %s8 = scalar_select 0, %s7, %s5
  $region1: #{tpu_custom_call.1} parent=0
    #allocation2 [shape = 'u8[8192]{0}', space=vmem, size = 0x2000, scoped, tag = 'input window, operand 0, single buffered']
    #allocation3 [shape = 's32[1]{0}', space=sflag, size = 0x4, scoped, tag = 'scoped memory for tpu_custom_call.1']
    #allocation4 [shape = 's32[1]{0}', space=sflag, size = 0x4, scoped, tag = 'scoped memory for tpu_custom_call.1']
    #allocation5 [shape = 'u8[8192]{0}', space=vmem, size = 0x2000, scoped, tag = 'input window, operand 1, single buffered']
    #allocation6 [shape = 's32[1]{0}', space=sflag, size = 0x4, scoped, tag = 'scoped memory for tpu_custom_call.1']
    #allocation7 [shape = 'u8[4096]{0}', space=vmem, size = 0x1000, scoped, tag = 'output window, operand 0, single buffered']
    #allocation8 [shape = 'u8[4096]{0}', space=vmem, size = 0x1000, scoped, tag = 'output window, operand 1, single buffered']
    #allocation9 [shape = 's32[1]{0}', space=sflag, size = 0x4, scoped, tag = 'scoped memory for tpu_custom_call.1']
    %9 = vsyncpa [#allocation3], 0
    %10 = vsyncpa [#allocation6], 0
    %11 = vsyncpa [#allocation4], 0
    %12 = vsyncpa [#allocation9], 0
    // Predicated region
    $region2: #{tpu_custom_call.1} parent=1 // pred_check
      _
    $region3: #{tpu_custom_call.1} parent=1 // pred_check_branch
      %14 = sbr.rel (0) target = $region5
    $region4: #{tpu_custom_call.1} parent=1 // pred_region
      %s16 = ssub.s32 256, 256
      %17 = vsyncadd [#allocation3], %s16
      %s18 = sshll.u32 [#allocation2], 4
      %s19 = int_to_ptr.vmem [resolvable:$true] %s18
      %24 = dma.hbm_to_vmem [thread:$0]  %s0, 256, %s19, [#allocation3], 128, 128, 8
    $region5: #{tpu_custom_call.1} parent=1 // pred_fallthru
      _
    // Predicated region
    $region6: #{tpu_custom_call.1} parent=1 // pred_check
      _
    $region7: #{tpu_custom_call.1} parent=1 // pred_check_branch
      %26 = sbr.rel (0) target = $region9
    $region8: #{tpu_custom_call.1} parent=1 // pred_region
      %s28 = ssub.s32 256, 256
      %29 = vsyncadd [#allocation6], %s28
      %s30 = sshll.u32 [#allocation5], 4
      %s31 = int_to_ptr.vmem [resolvable:$true] %s30
      %36 = dma.hbm_to_vmem [thread:$0]  %s1, 256, %s31, [#allocation6], 128, 128, 8
    $region9: #{tpu_custom_call.1} parent=1 // pred_fallthru
      _
    // Predicated region
    $region10: #{tpu_custom_call.1} parent=1 // pred_check
      _
    $region11: #{tpu_custom_call.1} parent=1 // pred_check_branch
      %38 = sbr.rel (0) target = $region13
    $region12: #{tpu_custom_call.1} parent=1 // pred_region
      %39 = dma.done [#allocation3], 256
    $region13: #{tpu_custom_call.1} parent=1 // pred_fallthru
      _
    // Predicated region
    $region14: #{tpu_custom_call.1} parent=1 // pred_check
      _
    $region15: #{tpu_custom_call.1} parent=1 // pred_check_branch
      %41 = sbr.rel (0) target = $region17
    $region16: #{tpu_custom_call.1} parent=1 // pred_region
      %42 = dma.done [#allocation6], 256
    $region17: #{tpu_custom_call.1} parent=1 // pred_fallthru
      _
    %v43 = vld [vmem:[#allocation2] sm:$0xff]
    %v44 = vld [vmem:[#allocation2 + $0x8] sm:$0xff]
    %v45 = vld [vmem:[#allocation5] sm:$0xff]
    %v46 = vld [vmem:[#allocation5 + $0x8] sm:$0xff]
    %s47 = smul.u32 0, 16
    %v48 = vlaneseq
    %v49 = vshrl.u32 %v48, 7
    %v50 = vadd.s32 %v49, 8
    %v51 = vstv %s47
    %v52 = vadd.s32 %v51, %v49
    %v53 = vadd.s32 %v51, %v50
    %vm54 = vcmp.lt.s32.totalorder %v52, 10
    %vm55 = vcmp.lt.s32.totalorder %v53, 10
    %v56 = vmul.f32 %v43, 2.0
    %v57 = vmul.f32 %v44, 2.0
    %vm58 = vcmask 261120
    %v59 = vsel %vm58, %v56, -inf
    %60 = vmax.xlane.f32.xlu0 %v59
    %v61 = vpop.xlane.xlu0 %60
    %v62 = vsel %vm58, %v57, -inf
    %63 = vmax.xlane.f32.xlu0 %v62
    %v64 = vpop.xlane.xlu0 %63
    %v65 = vsub.f32 %v56, %v61
    %v66 = vsub.f32 %v57, %v64
    %v67 = vmul.f32 %v65, 1.442695
    %v68 = vpow.pop %v67
    %v69 = vmul.f32 %v66, 1.442695
    %v70 = vpow.pop %v69
    %v71 = vsel %vm58, %v68, 0.0
    %72 = vadd.xlane.f32.xlu0 %v71
    %v73 = vpop.xlane.xlu0 %72
    %v74 = vsel %vm58, %v70, 0.0
    %75 = vadd.xlane.f32.xlu0 %v74
    %v76 = vpop.xlane.xlu0 %75
    %v77 = vlog2.pop %v73
    %v78 = vmul.f32 %v77, 0.6931472
    %v79 = vlog2.pop %v76
    %v80 = vmul.f32 %v79, 0.6931472
    %v81 = vsub.f32 %v65, %v78
    %v82 = vsub.f32 %v66, %v80
    %v83 = vmul.f32 %v45, 2.0
    %v84 = vmul.f32 %v46, 2.0
    %v85 = vsel %vm58, %v83, -inf
    %86 = vmax.xlane.f32.xlu0 %v85
    %v87 = vpop.xlane.xlu0 %86
    %v88 = vsel %vm58, %v84, -inf
    %89 = vmax.xlane.f32.xlu0 %v88
    %v90 = vpop.xlane.xlu0 %89
    %v91 = vsub.f32 %v83, %v87
    %v92 = vsub.f32 %v84, %v90
    %v93 = vmul.f32 %v91, 1.442695
    %v94 = vpow.pop %v93
    %v95 = vmul.f32 %v92, 1.442695
    %v96 = vpow.pop %v95
    %v97 = vsel %vm58, %v94, 0.0
    %98 = vadd.xlane.f32.xlu0 %v97
    %v99 = vpop.xlane.xlu0 %98
    %v100 = vsel %vm58, %v96, 0.0
    %101 = vadd.xlane.f32.xlu0 %v100
    %v102 = vpop.xlane.xlu0 %101
    %v103 = vlog2.pop %v99
    %v104 = vmul.f32 %v103, 0.6931472
    %v105 = vlog2.pop %v102
    %v106 = vmul.f32 %v105, 0.6931472
    %v107 = vrcp.pop %v99
    %v108 = vmul.f32 1.0, %v107
    %v109 = vrcp.pop %v102
    %v110 = vmul.f32 1.0, %v109
    %v111 = vmul.f32 %v94, %v108
    %v112 = vmul.f32 %v96, %v110
    %v113 = vsub.f32 %v91, %v104
    %v114 = vsub.f32 %v92, %v106
    %vm115 = vcmp.gt.f32.partialorder %v111, 0.0
    %vm116 = vcmp.gt.f32.partialorder %v112, 0.0
    %v117 = vsub.f32 %v113, %v81
    %v118 = vsub.f32 %v114, %v82
    %v119 = vmul.f32 %v111, %v117
    %v120 = vmul.f32 %v112, %v118
    %v121 = vsel %vm115, %v119, 0.0
    %v122 = vsel %vm116, %v120, 0.0
    %v123 = vsel %vm54, 1, 0
    %v124 = vsel %vm55, 1, 0
    %vm125 = vcmp.eq.s32.totalorder %v123, 1
    %vm126 = vcmp.eq.s32.totalorder %v124, 1
    %v127 = vsel %vm125, %v121, 0.0
    %v128 = vsel %vm126, %v122, 0.0
    %v129 = vsel %vm58, %v43, -inf
    %130 = vmax.xlane.f32.xlu0 %v129
    %v131 = vpop.xlane.xlu0 %130
    %v132 = vsel %vm58, %v44, -inf
    %133 = vmax.xlane.f32.xlu0 %v132
    %v134 = vpop.xlane.xlu0 %133
    %v135 = vsub.f32 %v43, %v131
    %v136 = vsub.f32 %v44, %v134
    %v137 = vmul.f32 %v135, 1.442695
    %v138 = vpow.pop %v137
    %v139 = vmul.f32 %v136, 1.442695
    %v140 = vpow.pop %v139
    %v141 = vsel %vm58, %v138, 0.0
    %142 = vadd.xlane.f32.xlu0 %v141
    %v143 = vpop.xlane.xlu0 %142
    %v144 = vsel %vm58, %v140, 0.0
    %145 = vadd.xlane.f32.xlu0 %v144
    %v146 = vpop.xlane.xlu0 %145
    %v147 = vlog2.pop %v143
    %v148 = vmul.f32 %v147, 0.6931472
    %v149 = vlog2.pop %v146
    %v150 = vmul.f32 %v149, 0.6931472
    %v151 = vsub.f32 %v135, %v148
    %v152 = vsub.f32 %v136, %v150
    %v153 = vmul.f32 %v151, %v45
    %v154 = vmul.f32 %v152, %v46
    %v155 = vsel %vm125, %v153, 0.0
    %v156 = vsel %vm126, %v154, 0.0
    %v157 = vsel %vm58, %v127, 0.0
    %v158 = vsel %vm58, %v128, 0.0
    %v159 = vadd.f32 %v157, %v158
    %160 = vst.msk [vmem:[#allocation7] sm:$0xff] %vm58, %v159
    %v161 = vsel %vm58, %v155, 0.0
    %v162 = vsel %vm58, %v156, 0.0
    %v163 = vadd.f32 %v161, %v162
    %164 = vst.msk [vmem:[#allocation8] sm:$0xff] %vm58, %v163
    // Predicated region
    $region18: #{tpu_custom_call.1} parent=1 // pred_check
      _
    $region19: #{tpu_custom_call.1} parent=1 // pred_check_branch
      %166 = sbr.rel (0) target = $region21
    $region20: #{tpu_custom_call.1} parent=1 // pred_region
      %s168 = ssub.s32 128, 128
      %169 = vsyncadd [#allocation4], %s168
      %s171 = sshll.u32 [#allocation7], 4
      %s172 = int_to_ptr.vmem [resolvable:$true] %s171
      %174 = dma.vmem_to_hbm [thread:$0]  %s172, 128, %s2, [#allocation4]
    $region21: #{tpu_custom_call.1} parent=1 // pred_fallthru
      _
    // Predicated region
    $region22: #{tpu_custom_call.1} parent=1 // pred_check
      _
    $region23: #{tpu_custom_call.1} parent=1 // pred_check_branch
      %176 = sbr.rel (0) target = $region25
    $region24: #{tpu_custom_call.1} parent=1 // pred_region
      %s178 = ssub.s32 128, 128
      %179 = vsyncadd [#allocation9], %s178
      %s181 = sshll.u32 [#allocation8], 4
      %s182 = int_to_ptr.vmem [resolvable:$true] %s181
      %184 = dma.vmem_to_hbm [thread:$0]  %s182, 128, %s3, [#allocation9]
    $region25: #{tpu_custom_call.1} parent=1 // pred_fallthru
      _
    // Predicated region
    $region26: #{tpu_custom_call.1} parent=1 // pred_check
      _
    $region27: #{tpu_custom_call.1} parent=1 // pred_check_branch
      %186 = sbr.rel (0) target = $region29
    $region28: #{tpu_custom_call.1} parent=1 // pred_region
      %187 = dma.done [#allocation4], 128
    $region29: #{tpu_custom_call.1} parent=1 // pred_fallthru
      _
    // Predicated region
    $region30: #{tpu_custom_call.1} parent=1 // pred_check
      _
    $region31: #{tpu_custom_call.1} parent=1 // pred_check_branch
      %189 = sbr.rel (0) target = $region33
    $region32: #{tpu_custom_call.1} parent=1 // pred_region
      %190 = dma.done [#allocation9], 128
    $region33: #{tpu_custom_call.1} parent=1 // pred_fallthru
      _
    %191 = vsyncpa [#allocation3], 1
    %192 = vsyncpa [#allocation6], 1
    %193 = vsyncpa [#allocation4], 1
    %194 = vsyncpa [#allocation9], 1

</llo_original>
